<compile_context>
chip_gen: v5e
topology: v5e:2x2
jax: 0.10.0
libtpu: 0.0.40
codegen_flags: <defaults>
</compile_context>

<pallas_src>
import functools

import jax
import jax.numpy as jnp
from jax.experimental import pallas as pl
from jax.experimental.pallas import tpu as pltpu

_MIB = 1024 * 1024
# Double-buffered per-step working-set cap.  Safe on v7x (64 MiB physical
# VMEM, >=16 MiB headroom left for compiler scratch); v5e/v6e have 128 MiB.
_VMEM_WORKING_SET_CAP = 40 * _MIB


# ----------------------------------------------------------------------------
# Kernels
# ----------------------------------------------------------------------------
def _mask_concat_kernel(img_ref, hint_ref, mask_ref, out_ref, *, c_img):
    # img_ref  : (1, C_img,  TILE_R, LW)   VMEM
    # hint_ref : (1, C_hint, TILE_R, LW)   VMEM
    # mask_ref : (1, 1,      TILE_R, LW)   VMEM (one DMA per spatial tile,
    #                                            reused for every channel)
    # out_ref  : (1, C_img + C_hint, TILE_R, LW) VMEM
    #
    # Cast (1 - mask) to the image dtype so mixed bf16/f32 inputs stay narrow.
    keep = (1.0 - mask_ref[...]).astype(img_ref.dtype)
    # Two separate stores instead of a concatenate: halves peak vreg pressure
    # and keeps the hint half a pure load->store pass-through.
    out_ref[:, :c_img] = (img_ref[...] * keep).astype(out_ref.dtype)
    out_ref[:, c_img:] = hint_ref[...].astype(out_ref.dtype)


def _mask_only_kernel(img_ref, mask_ref, out_ref):
    # Structural fast path: masked images only (hints never touched).
    keep = (1.0 - mask_ref[...]).astype(img_ref.dtype)
    out_ref[...] = (img_ref[...] * keep).astype(out_ref.dtype)


# ----------------------------------------------------------------------------
# Tiling plan (pad-to-tile, working-set aware)
# ----------------------------------------------------------------------------
def _plan_tiles(hw, n, live_bytes_per_elem, max_tile_elems, sublane_mult):
    """Pick (lane_width, tile_r, n_tiles, rows_pad) for a padded lane-dense layout.

    live_bytes_per_elem: summed itemsize over every channel-stream that is
    live in VMEM per spatial element (inputs + mask + outputs).
    """
    # Lane width: largest power-of-two multiple of 128 not exceeding the
    # (128-padded) spatial extent, so output stores are unmasked `vst`.
    hw128 = ((hw + 127) // 128) * 128
    lw = 128
    for cand in (1024, 512, 256, 128):
        if cand <= hw128:
            lw = cand
            break
    rows = (hw + lw - 1) // lw  # unpadded row count (last row may be partial)

    # Row-tile bound from (a) the per-channel element budget and (b) the total
    # double-buffered VMEM working-set cap (all live channel tiles x 2 bufs).
    max_rows_elems = max(1, max_tile_elems // lw)
    bytes_per_row = lw * live_bytes_per_elem * 2          # x2: double buffered
    max_rows_vmem = max(1, _VMEM_WORKING_SET_CAP // bytes_per_row)
    max_rows = min(max_rows_elems, max_rows_vmem)
    max_rows = max(sublane_mult, (max_rows // sublane_mult) * sublane_mult)

    rows_up = ((rows + sublane_mult - 1) // sublane_mult) * sublane_mult
    tile_r = min(max_rows, rows_up)
    n_tiles = (rows + tile_r - 1) // tile_r

    # v7x megacore: guarantee >= 2 grid steps so the second TensorCore gets
    # work even at N=1; halve the tile rather than collapse to a single tile.
    if n * n_tiles < 2 and tile_r > sublane_mult:
        tile_r = max(sublane_mult, ((tile_r // 2) // sublane_mult) * sublane_mult)
        n_tiles = (rows + tile_r - 1) // tile_r

    rows_pad = n_tiles * tile_r
    return lw, tile_r, n_tiles, rows_pad


def _to_padded_layout(x, rows_pad, lw):
    """(N, C, H, W) -> (N, C, rows_pad, lw), zero-padding the flattened spatial axis."""
    n, c, h, w = x.shape
    hw = h * w
    flat = x.reshape(n, c, hw)
    pad = rows_pad * lw - hw
    if pad:
        flat = jnp.pad(flat, ((0, 0), (0, 0), (0, pad)))
    return flat.reshape(n, c, rows_pad, lw)


def _vmem_limit_bytes(working_set_bytes):
    # Explicitly cover the double-buffered working set (+25% and +2 MiB of
    # slack), but never request more than 48 MiB so the kernel still fits
    # v7x's 64 MiB physical VMEM with headroom for compiler scratch.
    return int(min(max(working_set_bytes * 5 // 4 + 2 * _MIB, 32 * _MIB), 48 * _MIB))


# ----------------------------------------------------------------------------
# Wrappers
# ----------------------------------------------------------------------------
def manga_inpainting_build_inputs(images, hints, masks, *, max_tile_elems=256 * 1024):
    """images: (N, C_img, H, W); hints: (N, C_hint, H, W); masks: (N, 1, H, W).

    Returns concat(images * (1 - masks), hints, axis=1) -> (N, C_img+C_hint, H, W),
    i.e. the 6-channel input the PyTorch model feeds to its generator.
    """
    n, c_img, h, w = images.shape
    c_hint = hints.shape[1]
    c_out = c_img + c_hint
    hw = h * w
    out_dtype = images.dtype

    isz = lambda a: jnp.dtype(a).itemsize
    # Per-element HBM/VMEM bytes of every live channel-stream per step:
    # C_img image + C_hint hint + 1 mask inputs, plus C_out output channels.
    live_bytes_per_elem = (c_img * isz(images.dtype) + c_hint * isz(hints.dtype)
                           + isz(masks.dtype) + c_out * isz(out_dtype))
    min_itemsize = min(isz(images.dtype), isz(hints.dtype), isz(masks.dtype))
    sublane_mult = max(8, 32 // max(1, min_itemsize))     # 8 f32, 16 bf16

    lw, tile_r, n_tiles, rows_pad = _plan_tiles(
        hw, n, live_bytes_per_elem, max_tile_elems, sublane_mult)

    img_f = _to_padded_layout(images, rows_pad, lw)
    hint_f = _to_padded_layout(hints, rows_pad, lw)
    mask_f = _to_padded_layout(masks, rows_pad, lw)

    working_set = live_bytes_per_elem * tile_r * lw * 2
    kernel = functools.partial(_mask_concat_kernel, c_img=c_img)

    out = pl.pallas_call(
        kernel,
        out_shape=jax.ShapeDtypeStruct((n, c_out, rows_pad, lw), out_dtype),
        grid_spec=pl.GridSpec(
            grid=(n, n_tiles),
            in_specs=[
                pl.BlockSpec((1, c_img, tile_r, lw), lambda b, t: (b, 0, t, 0)),
                pl.BlockSpec((1, c_hint, tile_r, lw), lambda b, t: (b, 0, t, 0)),
                pl.BlockSpec((1, 1, tile_r, lw), lambda b, t: (b, 0, t, 0)),
            ],
            out_specs=pl.BlockSpec((1, c_out, tile_r, lw), lambda b, t: (b, 0, t, 0)),
        ),
        compiler_params=pltpu.CompilerParams(
            # Both axes are independent; the spatial-tile axis lets v7x's
            # second TensorCore take half the work even when N is 1-2.
            dimension_semantics=("parallel", "parallel"),
            vmem_limit_bytes=_vmem_limit_bytes(working_set),
        ),
    )(img_f, hint_f, mask_f)

    out = out.reshape(n, c_out, rows_pad * lw)[:, :, :hw]
    return out.reshape(n, c_out, h, w)


def manga_inpainting_mask_images(images, masks, *, max_tile_elems=256 * 1024):
    """Structural fast path: returns only images * (1 - masks).

    Skips the hint pass-through copy entirely (7 channel-passes of HBM traffic
    instead of 13, ~1.8x less bytes moved).  Use when the generator can take
    hints as a separate input / fuse the concat into its first conv.
    """
    n, c_img, h, w = images.shape
    hw = h * w
    out_dtype = images.dtype

    isz = lambda a: jnp.dtype(a).itemsize
    live_bytes_per_elem = c_img * (isz(images.dtype) + isz(out_dtype)) + isz(masks.dtype)
    min_itemsize = min(isz(images.dtype), isz(masks.dtype))
    sublane_mult = max(8, 32 // max(1, min_itemsize))

    lw, tile_r, n_tiles, rows_pad = _plan_tiles(
        hw, n, live_bytes_per_elem, max_tile_elems, sublane_mult)

    img_f = _to_padded_layout(images, rows_pad, lw)
    mask_f = _to_padded_layout(masks, rows_pad, lw)

    working_set = live_bytes_per_elem * tile_r * lw * 2

    out = pl.pallas_call(
        _mask_only_kernel,
        out_shape=jax.ShapeDtypeStruct((n, c_img, rows_pad, lw), out_dtype),
        grid_spec=pl.GridSpec(
            grid=(n, n_tiles),
            in_specs=[
                pl.BlockSpec((1, c_img, tile_r, lw), lambda b, t: (b, 0, t, 0)),
                pl.BlockSpec((1, 1, tile_r, lw), lambda b, t: (b, 0, t, 0)),
            ],
            out_specs=pl.BlockSpec((1, c_img, tile_r, lw), lambda b, t: (b, 0, t, 0)),
        ),
        compiler_params=pltpu.CompilerParams(
            dimension_semantics=("parallel", "parallel"),
            vmem_limit_bytes=_vmem_limit_bytes(working_set),
        ),
    )(img_f, mask_f)

    out = out.reshape(n, c_img, rows_pad * lw)[:, :, :hw]
    return out.reshape(n, c_img, h, w)


def manga_inpainting_forward(images, hints, masks):
    """Forward pass of MangaInpaintingModel up to the generator call.

    # TODO(synk): MangaInpaintGenerator is not defined in the provided source,
    # so the generator itself cannot be translated; this returns the 6-channel
    # `inputs` tensor (cat(images * (1 - masks), hints, dim=1)) the generator
    # would consume.
    """
    return manga_inpainting_build_inputs(images, hints, masks)


# ----------------------------------------------------------------------------
# Self-test
# ----------------------------------------------------------------------------
if __name__ == "__main__":
    key = jax.random.PRNGKey(0)
    k1, k2, k3, k4, k5, k6, k7 = jax.random.split(key, 7)

    def ref_inputs(images, hints, masks):
        keep = (1.0 - masks).astype(images.dtype)
        return jnp.concatenate([images * keep, hints.astype(images.dtype)], axis=1)

    def ref_masked(images, masks):
        return images * (1.0 - masks).astype(images.dtype)

    # --- small f32 test ------------------------------------------------------
    n, h, w = 2, 16, 16
    images = jax.random.normal(k1, (n, 3, h, w), dtype=jnp.float32)
    hints = jax.random.normal(k2, (n, 3, h, w), dtype=jnp.float32)
    masks = (jax.random.uniform(k3, (n, 1, h, w)) > 0.5).astype(jnp.float32)

    out = jax.block_until_ready(manga_inpainting_forward(images, hints, masks))
    assert out.shape == (n, 6, h, w)
    assert jnp.allclose(out, ref_inputs(images, hints, masks), atol=1e-6)

    out_masked = jax.block_until_ready(manga_inpainting_mask_images(images, masks))
    assert out_masked.shape == (n, 3, h, w)
    assert jnp.allclose(out_masked, ref_masked(images, masks), atol=1e-6)

    # --- awkward shape (H*W not a multiple of 128) -> padding path -----------
    n1, h1, w1 = 1, 20, 25
    images1 = jax.random.normal(k4, (n1, 3, h1, w1), dtype=jnp.float32)
    hints1 = jax.random.normal(k5, (n1, 3, h1, w1), dtype=jnp.float32)
    masks1 = (jax.random.uniform(k6, (n1, 1, h1, w1)) > 0.5).astype(jnp.float32)
    out1 = jax.block_until_ready(manga_inpainting_forward(images1, hints1, masks1))
    assert out1.shape == (n1, 6, h1, w1)
    assert jnp.allclose(out1, ref_inputs(images1, hints1, masks1), atol=1e-6)

    # --- multi-tile path (small per-channel tile budget forces several tiles) -
    n2, h2, w2 = 1, 64, 256
    images2 = jax.random.normal(k7, (n2, 3, h2, w2), dtype=jnp.float32)
    hints2 = jax.random.normal(k1, (n2, 3, h2, w2), dtype=jnp.float32)
    masks2 = (jax.random.uniform(k2, (n2, 1, h2, w2)) > 0.5).astype(jnp.float32)
    out2 = jax.block_until_ready(
        manga_inpainting_build_inputs(images2, hints2, masks2, max_tile_elems=8 * 1024)
    )
    assert jnp.allclose(out2, ref_inputs(images2, hints2, masks2), atol=1e-6)

    # --- mixed dtype: bf16 images/hints with f32 mask -------------------------
    images_bf = images.astype(jnp.bfloat16)
    hints_bf = hints.astype(jnp.bfloat16)
    out_bf = jax.block_until_ready(
        manga_inpainting_forward(images_bf, hints_bf, masks)
    )
    assert out_bf.dtype == jnp.bfloat16
    assert jnp.allclose(
        out_bf.astype(jnp.float32),
        ref_inputs(images_bf, hints_bf, masks).astype(jnp.float32),
        atol=1e-2,
    )

    print("KERNEL_OK")
</pallas_src>

<mosaic_0001>
module attributes {stable_mosaic.version = 11 : i64} {
  func.func @_mask_concat_kernel(%arg0: i32, %arg1: i32, %arg2: memref<1x3x8x256xf32, #tpu.memory_space<vmem>>, %arg3: memref<1x3x8x256xf32, #tpu.memory_space<vmem>>, %arg4: memref<1x1x8x256xf32, #tpu.memory_space<vmem>>, %arg5: memref<1x6x8x256xf32, #tpu.memory_space<vmem>>) attributes {dimension_semantics = [#tpu.dimension_semantics<parallel>, #tpu.dimension_semantics<parallel>], iteration_bounds = array<i64: 2, 1>, scalar_prefetch = 0 : i64, scratch_operands = 0 : i64, tpu.core_type = #tpu.core_type<tc>, window_params = [{transform_indices = @transform_0, window_bounds = array<i64: 1, 3, 8, 256>}, {transform_indices = @transform_1, window_bounds = array<i64: 1, 3, 8, 256>}, {transform_indices = @transform_2, window_bounds = array<i64: 1, 1, 8, 256>}, {transform_indices = @transform_3, window_bounds = array<i64: 1, 6, 8, 256>}]} {
    %c0 = arith.constant 0 : index
    %c0_0 = arith.constant 0 : index
    %c0_1 = arith.constant 0 : index
    %c0_2 = arith.constant 0 : index
    %0 = vector.load %arg4[%c0, %c0_0, %c0_1, %c0_2] : memref<1x1x8x256xf32, #tpu.memory_space<vmem>>, vector<1x1x8x256xf32>
    %cst = arith.constant 1.000000e+00 : f32
    %1 = vector.broadcast %cst : f32 to vector<1x1x8x256xf32>
    %2 = arith.subf %1, %0 : vector<1x1x8x256xf32>
    %c0_3 = arith.constant 0 : index
    %c0_4 = arith.constant 0 : index
    %c0_5 = arith.constant 0 : index
    %c0_6 = arith.constant 0 : index
    %3 = vector.load %arg2[%c0_3, %c0_4, %c0_5, %c0_6] : memref<1x3x8x256xf32, #tpu.memory_space<vmem>>, vector<1x3x8x256xf32>
    %4 = vector.broadcast %2 : vector<1x1x8x256xf32> to vector<1x3x8x256xf32>
    %5 = arith.mulf %3, %4 : vector<1x3x8x256xf32>
    %c0_7 = arith.constant 0 : index
    %c0_8 = arith.constant 0 : index
    %c0_9 = arith.constant 0 : index
    %c0_10 = arith.constant 0 : index
    %6 = vector.load %arg5[%c0_7, %c0_8, %c0_9, %c0_10] : memref<1x6x8x256xf32, #tpu.memory_space<vmem>>, vector<1x3x8x256xf32>
    tpu.vector_store %arg5[%c0_7, %c0_8, %c0_9, %c0_10], %5 {strides = array<i32>} : memref<1x6x8x256xf32, #tpu.memory_space<vmem>>, vector<1x3x8x256xf32>,
    %c0_11 = arith.constant 0 : index
    %c0_12 = arith.constant 0 : index
    %c0_13 = arith.constant 0 : index
    %c0_14 = arith.constant 0 : index
    %7 = vector.load %arg3[%c0_11, %c0_12, %c0_13, %c0_14] : memref<1x3x8x256xf32, #tpu.memory_space<vmem>>, vector<1x3x8x256xf32>
    %c0_15 = arith.constant 0 : index
    %c3 = arith.constant 3 : index
    %c0_16 = arith.constant 0 : index
    %c0_17 = arith.constant 0 : index
    %8 = vector.load %arg5[%c0_15, %c3, %c0_16, %c0_17] : memref<1x6x8x256xf32, #tpu.memory_space<vmem>>, vector<1x3x8x256xf32>
    tpu.vector_store %arg5[%c0_15, %c3, %c0_16, %c0_17], %7 {strides = array<i32>} : memref<1x6x8x256xf32, #tpu.memory_space<vmem>>, vector<1x3x8x256xf32>,
    return
  }
  func.func @transform_0(%arg0: i32, %arg1: i32) -> (i32, i32, i32, i32) {
    %c0_i32 = arith.constant 0 : i32
    %c0_i32_0 = arith.constant 0 : i32
    %c0_i32_1 = arith.constant 0 : i32
    return %arg0, %c0_i32, %arg1, %c0_i32_0 : i32, i32, i32, i32
  }
  func.func @transform_1(%arg0: i32, %arg1: i32) -> (i32, i32, i32, i32) {
    %c0_i32 = arith.constant 0 : i32
    %c0_i32_0 = arith.constant 0 : i32
    %c0_i32_1 = arith.constant 0 : i32
    return %arg0, %c0_i32, %arg1, %c0_i32_0 : i32, i32, i32, i32
  }
  func.func @transform_2(%arg0: i32, %arg1: i32) -> (i32, i32, i32, i32) {
    %c0_i32 = arith.constant 0 : i32
    %c0_i32_0 = arith.constant 0 : i32
    %c0_i32_1 = arith.constant 0 : i32
    return %arg0, %c0_i32, %arg1, %c0_i32_0 : i32, i32, i32, i32
  }
  func.func @transform_3(%arg0: i32, %arg1: i32) -> (i32, i32, i32, i32) {
    %c0_i32 = arith.constant 0 : i32
    %c0_i32_0 = arith.constant 0 : i32
    %c0_i32_1 = arith.constant 0 : i32
    return %arg0, %c0_i32, %arg1, %c0_i32_0 : i32, i32, i32, i32
  }
}

</mosaic_0001>

<llo_original>
// kernel: tpu_custom_call.1
$region0: #{tpu_custom_call.1}
  #allocation0 [shape = 'u32[]', space=smem, size = 0x4, offset = 0x4, fixed_abs, tag = 'smem constant byte address 0x4 - core index']
  #allocation1 [shape = 'u32[72,128]{1,0:T(1,128)}', space=vmem, size = 0x9000, scoped, tag = 'internal scratch']
  %s0 = inlined_call_operand.hbm [shape: f32[2,3,8,256], index: 0, kind: input, shape index: {}]
  %s1 = inlined_call_operand.hbm [shape: f32[2,3,8,256], index: 1, kind: input, shape index: {}]
  %s2 = inlined_call_operand.hbm [shape: f32[2,1,8,256], index: 2, kind: input, shape index: {}]
  %s3 = inlined_call_operand.hbm [shape: f32[2,6,8,256], index: 3, kind: output, shape index: {}]
  %s4 = sld [smem:[#allocation0]]
  $region57: #{tpu_custom_call.1} parent=0
    _
  %s6 = ssub.s32 1, %s4
  %s7 = scalar_select 0, %s6, %s4
  $region1: #{tpu_custom_call.1} parent=0
    #allocation2 [shape = 'u8[49152]{0}', space=vmem, size = 0xc000, scoped, tag = 'input window, operand 0']
    #allocation3 [shape = 's32[2]{0}', space=sflag, size = 0x8, scoped, tag = 'scoped memory for tpu_custom_call.1']
    #allocation4 [shape = 's32[2]{0}', space=sflag, size = 0x8, scoped, tag = 'scoped memory for tpu_custom_call.1']
    #allocation5 [shape = 'u8[49152]{0}', space=vmem, size = 0xc000, scoped, tag = 'input window, operand 1']
    #allocation6 [shape = 's32[2]{0}', space=sflag, size = 0x8, scoped, tag = 'scoped memory for tpu_custom_call.1']
    #allocation7 [shape = 'u8[16384]{0}', space=vmem, size = 0x4000, scoped, tag = 'input window, operand 2']
    #allocation8 [shape = 'u8[98304]{0}', space=vmem, size = 0x18000, scoped, tag = 'output window, operand 0']
    %8 = vsyncpa [#allocation3], 0
    %s9 = scalar_lea.sflag [#allocation3], 1
    %10 = vsyncpa %s9, 0
    %11 = vsyncpa [#allocation6], 0
    %s12 = scalar_lea.sflag [#allocation6], 1
    %13 = vsyncpa %s12, 0
    %14 = vsyncpa [#allocation4], 0
    %s15 = scalar_lea.sflag [#allocation4], 1
    %16 = vsyncpa %s15, 0
    loop: start=0, step=1, limit=4
    $region2: #{tpu_custom_call.1} parent=1 // loop_pre_header
      _
    $region3: #{tpu_custom_call.1} parent=1 // loop_header
      %s18 = sphi 0, %s22
      %p19 = scmp.ge.s32.totalorder %s18, 4
      %s25 = sphi 0, %s37
      %s26 = sphi 0, %s33
      %s27 = sphi 0, %s25
      %s28 = sphi 0, %s26
      %s29 = sphi 0, %s27
      %s30 = sphi 0, %s28
      %s42 = sphi 0, %s44
      %s45 = sphi 0, %s42
      %s46 = sphi 0, %s45
      %s62 = sphi 0, %s46
      %s70 = sphi 0, %s72
      %s73 = sphi 0, %s70
      %s74 = sphi 0, %s73
      %s90 = sphi 0, %s74
      %s98 = sphi 0, %s100
      %s101 = sphi 0, %s98
      %s102 = sphi 0, %s101
      %s118 = sphi 0, %s102
      %s126 = sphi 0, %s128
      %s129 = sphi 0, %s126
      %s130 = sphi 0, %s129
      %s146 = sphi 0, %s130
    $region4: #{tpu_custom_call.1} parent=1 // loop_header_branch
      %21 = sbr.rel (%p19) target = $region8
    $region5: #{tpu_custom_call.1} parent=1 // loop_body
      %s23 = ssub.s32 %s18, 1
      %s24 = ssub.s32 %s18, 2
      %s31 = sadd.s32 1, %s26
      %p32 = scmp.ge.s32.totalorder %s31, 1
      %s33 = scalar_select %p32, 0, %s31
      %s34 = sadd.s32 1, %s25
      %s35 = scalar_select %p32, %s34, %s25
      %p36 = scmp.ge.s32.totalorder %s35, 2
      %s37 = scalar_select %p36, 0, %s35
      %s38 = ssub.s32 %s25, %s37
      %s39 = ssub.s32 %s26, %s33
      %s40 = sor.u32 %s38, %s39
      %p41 = scmp.eq.s32.totalorder %s40, 0
      %s43 = sadd.s32 %s42, 1
      %s44 = scalar_select %p41, %s42, %s43
      %p47 = pneg %p41
      %p48 = scmp.eq.s32.totalorder %s18, 1
      %p49 = por %p47, %p48
      %p50 = scmp.ne.s32.totalorder %s42, %s45
      %p51 = scmp.eq.s32.totalorder %s18, 0
      %p52 = por %p50, %p51
      %p53 = scmp.ne.s32.totalorder %s42, %s45
      %p54 = scmp.eq.s32.totalorder %s23, 1
      %p55 = por %p53, %p54
      %p56 = scmp.ne.s32.totalorder %s45, %s46
      %p57 = scmp.eq.s32.totalorder %s23, 0
      %p58 = por %p56, %p57
      %p59 = scmp.ne.s32.totalorder %s45, %s46
      %p60 = scmp.eq.s32.totalorder %s24, 1
      %p61 = por %p59, %p60
      %p63 = scmp.ne.s32.totalorder %s46, %s62
      %p64 = scmp.eq.s32.totalorder %s24, 0
      %p65 = por %p63, %p64
      %s66 = ssub.s32 %s25, %s37
      %s67 = ssub.s32 %s26, %s33
      %s68 = sor.u32 %s66, %s67
      %p69 = scmp.eq.s32.totalorder %s68, 0
      %s71 = sadd.s32 %s70, 1
      %s72 = scalar_select %p69, %s70, %s71
      %p75 = pneg %p69
      %p76 = scmp.eq.s32.totalorder %s18, 1
      %p77 = por %p75, %p76
      %p78 = scmp.ne.s32.totalorder %s70, %s73
      %p79 = scmp.eq.s32.totalorder %s18, 0
      %p80 = por %p78, %p79
      %p81 = scmp.ne.s32.totalorder %s70, %s73
      %p82 = scmp.eq.s32.totalorder %s23, 1
      %p83 = por %p81, %p82
      %p84 = scmp.ne.s32.totalorder %s73, %s74
      %p85 = scmp.eq.s32.totalorder %s23, 0
      %p86 = por %p84, %p85
      %p87 = scmp.ne.s32.totalorder %s73, %s74
      %p88 = scmp.eq.s32.totalorder %s24, 1
      %p89 = por %p87, %p88
      %p91 = scmp.ne.s32.totalorder %s74, %s90
      %p92 = scmp.eq.s32.totalorder %s24, 0
      %p93 = por %p91, %p92
      %s94 = ssub.s32 %s25, %s37
      %s95 = ssub.s32 %s26, %s33
      %s96 = sor.u32 %s94, %s95
      %p97 = scmp.eq.s32.totalorder %s96, 0
      %s99 = sadd.s32 %s98, 1
      %s100 = scalar_select %p97, %s98, %s99
      %p103 = pneg %p97
      %p104 = scmp.eq.s32.totalorder %s18, 1
      %p105 = por %p103, %p104
      %p106 = scmp.ne.s32.totalorder %s98, %s101
      %p107 = scmp.eq.s32.totalorder %s18, 0
      %p108 = por %p106, %p107
      %p109 = scmp.ne.s32.totalorder %s98, %s101
      %p110 = scmp.eq.s32.totalorder %s23, 1
      %p111 = por %p109, %p110
      %p112 = scmp.ne.s32.totalorder %s101, %s102
      %p113 = scmp.eq.s32.totalorder %s23, 0
      %p114 = por %p112, %p113
      %p115 = scmp.ne.s32.totalorder %s101, %s102
      %p116 = scmp.eq.s32.totalorder %s24, 1
      %p117 = por %p115, %p116
      %p119 = scmp.ne.s32.totalorder %s102, %s118
      %p120 = scmp.eq.s32.totalorder %s24, 0
      %p121 = por %p119, %p120
      %s122 = ssub.s32 %s25, %s37
      %s123 = ssub.s32 %s26, %s33
      %s124 = sor.u32 %s122, %s123
      %p125 = scmp.eq.s32.totalorder %s124, 0
      %s127 = sadd.s32 %s126, 1
      %s128 = scalar_select %p125, %s126, %s127
      %p131 = pneg %p125
      %p132 = scmp.eq.s32.totalorder %s18, 1
      %p133 = por %p131, %p132
      %p134 = scmp.ne.s32.totalorder %s126, %s129
      %p135 = scmp.eq.s32.totalorder %s18, 0
      %p136 = por %p134, %p135
      %p137 = scmp.ne.s32.totalorder %s126, %s129
      %p138 = scmp.eq.s32.totalorder %s23, 1
      %p139 = por %p137, %p138
      %p140 = scmp.ne.s32.totalorder %s129, %s130
      %p141 = scmp.eq.s32.totalorder %s23, 0
      %p142 = por %p140, %p141
      %p143 = scmp.ne.s32.totalorder %s129, %s130
      %p144 = scmp.eq.s32.totalorder %s24, 1
      %p145 = por %p143, %p144
      %p147 = scmp.ne.s32.totalorder %s130, %s146
      %p148 = scmp.eq.s32.totalorder %s24, 0
      %p149 = por %p147, %p148
      %p150 = scmp.le.s32.totalorder 1, %s18
      %p151 = scmp.lt.s32.totalorder %s18, 3
      %p152 = pnand %p150, %p151
      %p153 = pneg %p152
      // Predicated region
      $region9: #{tpu_custom_call.1} parent=5 // pred_check
        _
      $region10: #{tpu_custom_call.1} parent=5 // pred_check_branch
        %155 = sbr.rel (%p152) target = $region12
      $region11: #{tpu_custom_call.1} parent=5 // pred_region
        %s156 = ssub.s32 %s18, 1
      $region12: #{tpu_custom_call.1} parent=5 // pred_fallthru
        _
      %p157 = scmp.lt.s32.totalorder %s18, 2
      // Predicated region
      $region13: #{tpu_custom_call.1} parent=5 // pred_check
        %p158 = pneg %p157
      $region14: #{tpu_custom_call.1} parent=5 // pred_check_branch
        %160 = sbr.rel (%p158) target = $region16
      $region15: #{tpu_custom_call.1} parent=5 // pred_region
        // Predicated region
        $region17: #{tpu_custom_call.1} parent=15 // pred_check
          %p161 = pneg %p52
        $region18: #{tpu_custom_call.1} parent=15 // pred_check_branch
          %163 = sbr.rel (%p161) target = $region20
        $region19: #{tpu_custom_call.1} parent=15 // pred_region
          %s164 = sand.u32 %s42, 1
          %s165 = scalar_lea.sflag [#allocation3], %s164
          %s166 = sand.u32 %s42, 1
          %s167 = smul.addr %s166, 48
          %s168 = scalar_lea.vmem [#allocation2], %s167
          %170 = vsyncadd %s165, 0
          %s171 = smul.addr %s26, 2
          %s172 = smul.addr %s25, 6
          %s173 = sadd.s32 %s171, %s172
          %s174 = smul.addr %s173, 8
          %s175 = scalar_lea.hbm %s0, %s174
          %s176 = sshll.u32 %s175, 4
          %s177 = int_to_ptr.hbm [resolvable:$true] %s176
          %s178 = sshll.u32 %s168, 4
          %s179 = int_to_ptr.vmem [resolvable:$true] %s178
          %184 = dma.hbm_to_vmem [thread:$0]  %s177, 768, %s179, %s165, 256, 256, 16
        $region20: #{tpu_custom_call.1} parent=15 // pred_fallthru
          _
        // Predicated region
        $region21: #{tpu_custom_call.1} parent=15 // pred_check
          %p185 = pneg %p80
        $region22: #{tpu_custom_call.1} parent=15 // pred_check_branch
          %187 = sbr.rel (%p185) target = $region24
        $region23: #{tpu_custom_call.1} parent=15 // pred_region
          %s188 = sand.u32 %s18, 1
          %s189 = scalar_lea.sflag [#allocation6], %s188
          %s190 = sand.u32 %s70, 1
          %s191 = smul.addr %s190, 48
          %s192 = scalar_lea.vmem [#allocation5], %s191
          %194 = vsyncadd %s189, 0
          %s195 = smul.addr %s26, 2
          %s196 = smul.addr %s25, 6
          %s197 = sadd.s32 %s195, %s196
          %s198 = smul.addr %s197, 8
          %s199 = scalar_lea.hbm %s1, %s198
          %s200 = sshll.u32 %s199, 4
          %s201 = int_to_ptr.hbm [resolvable:$true] %s200
          %s202 = sshll.u32 %s192, 4
          %s203 = int_to_ptr.vmem [resolvable:$true] %s202
          %208 = dma.hbm_to_vmem [thread:$0]  %s201, 768, %s203, %s189, 256, 256, 16
        $region24: #{tpu_custom_call.1} parent=15 // pred_fallthru
          _
        // Predicated region
        $region25: #{tpu_custom_call.1} parent=15 // pred_check
          %p209 = pneg %p108
        $region26: #{tpu_custom_call.1} parent=15 // pred_check_branch
          %211 = sbr.rel (%p209) target = $region28
        $region27: #{tpu_custom_call.1} parent=15 // pred_region
          %s212 = sand.u32 %s18, 1
          %s213 = scalar_lea.sflag [#allocation6], %s212
          %s214 = sand.u32 %s98, 1
          %s215 = smul.addr %s214, 16
          %s216 = scalar_lea.vmem [#allocation7], %s215
          %218 = vsyncadd %s213, 0
          %s219 = smul.addr %s26, 2
          %s220 = smul.addr %s25, 2
          %s221 = sadd.s32 %s219, %s220
          %s222 = smul.addr %s221, 8
          %s223 = scalar_lea.hbm %s2, %s222
          %s225 = sshll.u32 %s223, 4
          %s226 = int_to_ptr.hbm [resolvable:$true] %s225
          %s227 = sshll.u32 %s216, 4
          %s228 = int_to_ptr.vmem [resolvable:$true] %s227
          %230 = dma.hbm_to_vmem [thread:$0]  %s226, 256, %s228, %s213
        $region28: #{tpu_custom_call.1} parent=15 // pred_fallthru
          _
      $region16: #{tpu_custom_call.1} parent=5 // pred_fallthru
        _
      %p231 = scmp.le.s32.totalorder 1, %s18
      %p232 = scmp.lt.s32.totalorder %s18, 3
      %p233 = pnand %p231, %p232
      %p234 = pneg %p233
      // Predicated region
      $region29: #{tpu_custom_call.1} parent=5 // pred_check
        _
      $region30: #{tpu_custom_call.1} parent=5 // pred_check_branch
        %236 = sbr.rel (%p233) target = $region32
      $region31: #{tpu_custom_call.1} parent=5 // pred_region
        %s237 = ssub.s32 %s18, 1
        %s238 = sand.u32 %s45, 1
        %s239 = scalar_lea.sflag [#allocation3], %s238
        %s240 = sand.u32 %s45, 1
        %s241 = smul.addr %s240, 48
        %s242 = scalar_lea.vmem [#allocation2], %s241
        // Predicated region
        $region33: #{tpu_custom_call.1} parent=31 // pred_check
          %p243 = pneg %p58
        $region34: #{tpu_custom_call.1} parent=31 // pred_check_branch
          %245 = sbr.rel (%p243) target = $region36
        $region35: #{tpu_custom_call.1} parent=31 // pred_region
          %247 = dma.done %s239, 768
        $region36: #{tpu_custom_call.1} parent=31 // pred_fallthru
          _
        %s248 = sand.u32 %s23, 1
        %s249 = scalar_lea.sflag [#allocation6], %s248
        %s250 = sand.u32 %s73, 1
        %s251 = smul.addr %s250, 48
        %s252 = scalar_lea.vmem [#allocation5], %s251
        // Predicated region
        $region37: #{tpu_custom_call.1} parent=31 // pred_check
          %p253 = pneg %p86
        $region38: #{tpu_custom_call.1} parent=31 // pred_check_branch
          %255 = sbr.rel (%p253) target = $region40
        $region39: #{tpu_custom_call.1} parent=31 // pred_region
          %257 = dma.done %s249, 768
        $region40: #{tpu_custom_call.1} parent=31 // pred_fallthru
          _
        %s258 = sand.u32 %s23, 1
        %s259 = scalar_lea.sflag [#allocation6], %s258
        %s260 = sand.u32 %s101, 1
        %s261 = smul.addr %s260, 16
        %s262 = scalar_lea.vmem [#allocation7], %s261
        // Predicated region
        $region41: #{tpu_custom_call.1} parent=31 // pred_check
          %p263 = pneg %p114
        $region42: #{tpu_custom_call.1} parent=31 // pred_check_branch
          %265 = sbr.rel (%p263) target = $region44
        $region43: #{tpu_custom_call.1} parent=31 // pred_region
          %267 = dma.done %s259, 256
        $region44: #{tpu_custom_call.1} parent=31 // pred_fallthru
          _
        %s268 = sand.u32 %s45, 1
        %s269 = scalar_lea.sflag [#allocation3], %s268
        %s270 = sand.u32 %s45, 1
        %s271 = smul.addr %s270, 48
        %s272 = scalar_lea.vmem [#allocation2], %s271
        %p273 = pneg %p58
        %p274 = pneg %p55
        %s275 = sand.u32 %s23, 1
        %s276 = scalar_lea.sflag [#allocation6], %s275
        %s277 = sand.u32 %s73, 1
        %s278 = smul.addr %s277, 48
        %s279 = scalar_lea.vmem [#allocation5], %s278
        %p280 = pneg %p86
        %p281 = pneg %p83
        %s282 = sand.u32 %s23, 1
        %s283 = scalar_lea.sflag [#allocation6], %s282
        %s284 = sand.u32 %s101, 1
        %s285 = smul.addr %s284, 16
        %s286 = scalar_lea.vmem [#allocation7], %s285
        %p287 = pneg %p114
        %p288 = pneg %p111
        %p289 = pneg %p142
        %p290 = pneg %p139
        %s291 = sand.u32 %s129, 1
        %s292 = scalar_lea.sflag [#allocation4], %s291
        %s293 = sand.u32 %s129, 1
        %s294 = smul.addr %s293, 96
        %s295 = scalar_lea.vmem [#allocation8], %s294
        %v296 = vld [vmem:[%s262] sm:$0xff]
        %v297 = vld [vmem:[%s262 + $0x8] sm:$0xff]
        %v298 = vsub.f32 1.0, %v296
        %v299 = vsub.f32 1.0, %v297
        %v300 = vld [vmem:[%s242] sm:$0xff]
        %v301 = vld [vmem:[%s242 + $0x8] sm:$0xff]
        %v302 = vld [vmem:[%s242 + $0x10] sm:$0xff]
        %v303 = vld [vmem:[%s242 + $0x18] sm:$0xff]
        %v304 = vld [vmem:[%s242 + $0x20] sm:$0xff]
        %v305 = vld [vmem:[%s242 + $0x28] sm:$0xff]
        %v306 = vmul.f32 %v300, %v298
        %v307 = vmul.f32 %v301, %v299
        %v308 = vmul.f32 %v302, %v298
        %v309 = vmul.f32 %v303, %v299
        %v310 = vmul.f32 %v304, %v298
        %v311 = vmul.f32 %v305, %v299
        %312 = vst [vmem:[%s295] sm:$0xff] %v306
        %313 = vst [vmem:[%s295 + $0x8] sm:$0xff] %v307
        %314 = vst [vmem:[%s295 + $0x10] sm:$0xff] %v308
        %315 = vst [vmem:[%s295 + $0x18] sm:$0xff] %v309
        %316 = vst [vmem:[%s295 + $0x20] sm:$0xff] %v310
        %317 = vst [vmem:[%s295 + $0x28] sm:$0xff] %v311
        %v318 = vld [vmem:[%s252] sm:$0xff]
        %v319 = vld [vmem:[%s252 + $0x8] sm:$0xff]
        %v320 = vld [vmem:[%s252 + $0x10] sm:$0xff]
        %v321 = vld [vmem:[%s252 + $0x18] sm:$0xff]
        %v322 = vld [vmem:[%s252 + $0x20] sm:$0xff]
        %v323 = vld [vmem:[%s252 + $0x28] sm:$0xff]
        %s324 = scalar_lea.vmem %s295, 48 [#allocation8]
        %325 = vst [vmem:[%s324] sm:$0xff] %v318
        %326 = vst [vmem:[%s324 + $0x8] sm:$0xff] %v319
        %327 = vst [vmem:[%s324 + $0x10] sm:$0xff] %v320
        %328 = vst [vmem:[%s324 + $0x18] sm:$0xff] %v321
        %329 = vst [vmem:[%s324 + $0x20] sm:$0xff] %v322
        %330 = vst [vmem:[%s324 + $0x28] sm:$0xff] %v323
        %s331 = sand.u32 %s129, 1
        %s332 = scalar_lea.sflag [#allocation4], %s331
        %s333 = sand.u32 %s129, 1
        %s334 = smul.addr %s333, 96
        %s335 = scalar_lea.vmem [#allocation8], %s334
        // Predicated region
        $region45: #{tpu_custom_call.1} parent=31 // pred_check
          %p336 = pneg %p139
        $region46: #{tpu_custom_call.1} parent=31 // pred_check_branch
          %338 = sbr.rel (%p336) target = $region48
        $region47: #{tpu_custom_call.1} parent=31 // pred_region
          %340 = vsyncadd %s332, 0
          %s341 = smul.addr %s28, 2
          %s342 = smul.addr %s27, 12
          %s343 = sadd.s32 %s341, %s342
          %s344 = smul.addr %s343, 8
          %s345 = scalar_lea.hbm %s3, %s344
          %s346 = sshll.u32 %s335, 4
          %s347 = int_to_ptr.vmem [resolvable:$true] %s346
          %s348 = sshll.u32 %s345, 4
          %s349 = int_to_ptr.hbm [resolvable:$true] %s348
          %354 = dma.vmem_to_hbm [thread:$0]  %s347, 1536, %s349, %s332, 256, 256, 16
        $region48: #{tpu_custom_call.1} parent=31 // pred_fallthru
          _
      $region32: #{tpu_custom_call.1} parent=5 // pred_fallthru
        _
      %p355 = scmp.le.s32.totalorder 2, %s18
      // Predicated region
      $region49: #{tpu_custom_call.1} parent=5 // pred_check
        %p356 = pneg %p355
      $region50: #{tpu_custom_call.1} parent=5 // pred_check_branch
        %358 = sbr.rel (%p356) target = $region52
      $region51: #{tpu_custom_call.1} parent=5 // pred_region
        %s359 = ssub.s32 %s18, 2
        // Predicated region
        $region53: #{tpu_custom_call.1} parent=51 // pred_check
          %p360 = pneg %p145
        $region54: #{tpu_custom_call.1} parent=51 // pred_check_branch
          %362 = sbr.rel (%p360) target = $region56
        $region55: #{tpu_custom_call.1} parent=51 // pred_region
          %s363 = sand.u32 %s130, 1
          %s364 = scalar_lea.sflag [#allocation4], %s363
          %s365 = sand.u32 %s130, 1
          %s366 = smul.addr %s365, 96
          %s367 = scalar_lea.vmem [#allocation8], %s366
          %369 = dma.done %s364, 1536
        $region56: #{tpu_custom_call.1} parent=51 // pred_fallthru
          _
      $region52: #{tpu_custom_call.1} parent=5 // pred_fallthru
        _
    $region6: #{tpu_custom_call.1} parent=1 // loop_footer
      %s22 = sadd.s32 1, %s18
    $region7: #{tpu_custom_call.1} parent=1 // loop_footer_branch
      %17 = sbr.rel target = $region3
    $region8: #{tpu_custom_call.1} parent=1 // loop_exit
      _
    %370 = vsyncpa [#allocation3], 1
    %s371 = scalar_lea.sflag [#allocation3], 1
    %372 = vsyncpa %s371, 1
    %373 = vsyncpa [#allocation6], 1
    %s374 = scalar_lea.sflag [#allocation6], 1
    %375 = vsyncpa %s374, 1
    %376 = vsyncpa [#allocation4], 1
    %s377 = scalar_lea.sflag [#allocation4], 1
    %378 = vsyncpa %s377, 1

</llo_original>
